<compile_context>
chip_gen: v7x
topology: tpu7x:2x2x1
jax: 0.10.0
libtpu: 0.0.40
codegen_flags: <defaults>
</compile_context>

<pallas_src>
import functools

import jax
import jax.numpy as jnp
from jax.experimental import pallas as pl
from jax.experimental.pallas import tpu as pltpu

M, K, N = 192, 64, 3      # implied addmm dims (see header comment)
ADD_CONST = float(K)      # ones(M,K) @ ones(K,N) == K at every output element


def _bias_plus_const_kernel(x_ref, o_ref, *, c):
    # out = x1 + (mat1 @ mat2), with the all-ones matmul folded to scalar c.
    # Pure VPU elementwise add on the whole (192, 3) tile; dtypes match (f32).
    o_ref[...] = x_ref[...] + c


@functools.partial(jax.jit, donate_argnums=0)
def model_forward(x1):
    """Mirrors Model.forward: addmm(x1, ones(1,3,64,64), ones(64,3,1,1))."""
    # Grid-less call; whole 2.3 KB array resident in VMEM, no tiling, no
    # wrapper reshapes (block == full array satisfies the (8,128) rule).
    return pl.pallas_call(
        functools.partial(_bias_plus_const_kernel, c=ADD_CONST),
        out_shape=jax.ShapeDtypeStruct(x1.shape, x1.dtype),
        in_specs=[pl.BlockSpec(memory_space=pltpu.MemorySpace.VMEM)],
        out_specs=pl.BlockSpec(memory_space=pltpu.MemorySpace.VMEM),
        # Reuse the (donated) input buffer for the output.
        input_output_aliases={0: 0},
    )(x1)


if __name__ == "__main__":
    key = jax.random.PRNGKey(0)
    # x1 plays the role of the addmm `input` (bias) operand, shape (M, N).
    x1 = jax.random.normal(key, (M, N), dtype=jnp.float32)

    # Pure-JAX reference with the un-folded addmm semantics.  Compute it BEFORE
    # the kernel call because x1's buffer is donated (invalidated) by the call.
    ref = x1 + jnp.ones((M, K), jnp.float32) @ jnp.ones((K, N), jnp.float32)
    ref = jax.block_until_ready(ref)

    out = jax.block_until_ready(model_forward(x1))

    assert out.shape == (M, N) and out.dtype == jnp.float32
    assert jnp.allclose(out, ref, atol=1e-5), "mismatch vs reference"

    print("KERNEL_OK")
</pallas_src>

<mosaic_0001>
module attributes {stable_mosaic.version = 11 : i64} {
  func.func @_bias_plus_const_kernel(%arg0: memref<192x3xf32, #tpu.memory_space<vmem>>, %arg1: memref<192x3xf32, #tpu.memory_space<vmem>>) attributes {dimension_semantics = [], scalar_prefetch = 0 : i64, scratch_operands = 0 : i64, tpu.core_type = #tpu.core_type<tc>} {
    %c0 = arith.constant 0 : index
    %c0_0 = arith.constant 0 : index
    %0 = vector.load %arg0[%c0, %c0_0] : memref<192x3xf32, #tpu.memory_space<vmem>>, vector<192x3xf32>
    %cst = arith.constant 6.400000e+01 : f32
    %1 = vector.broadcast %cst : f32 to vector<192x3xf32>
    %2 = arith.addf %0, %1 : vector<192x3xf32>
    %c0_1 = arith.constant 0 : index
    %c0_2 = arith.constant 0 : index
    %3 = vector.load %arg1[%c0_1, %c0_2] : memref<192x3xf32, #tpu.memory_space<vmem>>, vector<192x3xf32>
    tpu.vector_store %arg1[%c0_1, %c0_2], %2 {strides = array<i32>} : memref<192x3xf32, #tpu.memory_space<vmem>>, vector<192x3xf32>,
    return
  }
}

</mosaic_0001>

<llo_original>
// kernel: model_forward.1
$region0: #{model_forward.1}
  #allocation0 [shape = 'u32[]', space=smem, size = 0x4, offset = 0x4, fixed_abs, tag = 'smem constant byte address 0x4 - core index']
  #allocation1 [shape = 'u32[144,128]{1,0:T(1,128)}', space=vmem, size = 0x12000, scoped, tag = 'internal scratch']
  %s0 = inlined_call_operand.vmem [shape: f32[192,3], index: 0, kind: input, shape index: {}, may-alias: {0,1}]
  %s1 = inlined_call_operand.vmem [shape: f32[192,3], index: 1, kind: output, shape index: {}, may-alias: {0,1}]
  %s2 = sld [smem:[#allocation0]]
  $region14: #{model_forward.1} parent=0
    _
  %s4 = ssub.s32 1, %s2
  %s5 = scalar_select 0, %s4, %s2
  // Predicated region
  $region2: #{model_forward.1} parent=0 // pred_check
    _
  $region3: #{model_forward.1} parent=0 // pred_check_branch
    %7 = sbr.rel (0) target = $region5
  $region4: #{model_forward.1} parent=0 // pred_region
    _
  $region5: #{model_forward.1} parent=0 // pred_fallthru
    _
  %v8 = vld [vmem:[%s0] sm:$0xff]
  %v9 = vld [vmem:[%s0 + $0x8] sm:$0xff]
  %v10 = vld [vmem:[%s0 + $0x10] sm:$0xff]
  %v11 = vld [vmem:[%s0 + $0x18] sm:$0xff]
  %v12 = vld [vmem:[%s0 + $0x20] sm:$0xff]
  %v13 = vld [vmem:[%s0 + $0x28] sm:$0xff]
  %v14 = vld [vmem:[%s0 + $0x30] sm:$0xff]
  %v15 = vld [vmem:[%s0 + $0x38] sm:$0xff]
  %v16 = vld [vmem:[%s0 + $0x40] sm:$0xff]
  %v17 = vld [vmem:[%s0 + $0x48] sm:$0xff]
  %v18 = vld [vmem:[%s0 + $0x50] sm:$0xff]
  %v19 = vld [vmem:[%s0 + $0x58] sm:$0xff]
  %v20 = vld [vmem:[%s0 + $0x60] sm:$0xff]
  %v21 = vld [vmem:[%s0 + $0x68] sm:$0xff]
  %v22 = vld [vmem:[%s0 + $0x70] sm:$0xff]
  %v23 = vld [vmem:[%s0 + $0x78] sm:$0xff]
  %v24 = vld [vmem:[%s0 + $0x80] sm:$0xff]
  %v25 = vld [vmem:[%s0 + $0x88] sm:$0xff]
  %v26 = vld [vmem:[%s0 + $0x90] sm:$0xff]
  %v27 = vld [vmem:[%s0 + $0x98] sm:$0xff]
  %v28 = vld [vmem:[%s0 + $0xa0] sm:$0xff]
  %v29 = vld [vmem:[%s0 + $0xa8] sm:$0xff]
  %v30 = vld [vmem:[%s0 + $0xb0] sm:$0xff]
  %v31 = vld [vmem:[%s0 + $0xb8] sm:$0xff]
  %v32 = vadd.f32 %v8, 64.0
  %v33 = vadd.f32 %v9, 64.0
  %v34 = vadd.f32 %v10, 64.0
  %v35 = vadd.f32 %v11, 64.0
  %v36 = vadd.f32 %v12, 64.0
  %v37 = vadd.f32 %v13, 64.0
  %v38 = vadd.f32 %v14, 64.0
  %v39 = vadd.f32 %v15, 64.0
  %v40 = vadd.f32 %v16, 64.0
  %v41 = vadd.f32 %v17, 64.0
  %v42 = vadd.f32 %v18, 64.0
  %v43 = vadd.f32 %v19, 64.0
  %v44 = vadd.f32 %v20, 64.0
  %v45 = vadd.f32 %v21, 64.0
  %v46 = vadd.f32 %v22, 64.0
  %v47 = vadd.f32 %v23, 64.0
  %v48 = vadd.f32 %v24, 64.0
  %v49 = vadd.f32 %v25, 64.0
  %v50 = vadd.f32 %v26, 64.0
  %v51 = vadd.f32 %v27, 64.0
  %v52 = vadd.f32 %v28, 64.0
  %v53 = vadd.f32 %v29, 64.0
  %v54 = vadd.f32 %v30, 64.0
  %v55 = vadd.f32 %v31, 64.0
  %vm56 = vcmask 23552
  %57 = vst.msk [vmem:[%s1] sm:$0xff] %vm56, %v32
  %58 = vst.msk [vmem:[%s1 + $0x8] sm:$0xff] %vm56, %v33
  %59 = vst.msk [vmem:[%s1 + $0x10] sm:$0xff] %vm56, %v34
  %60 = vst.msk [vmem:[%s1 + $0x18] sm:$0xff] %vm56, %v35
  %61 = vst.msk [vmem:[%s1 + $0x20] sm:$0xff] %vm56, %v36
  %62 = vst.msk [vmem:[%s1 + $0x28] sm:$0xff] %vm56, %v37
  %63 = vst.msk [vmem:[%s1 + $0x30] sm:$0xff] %vm56, %v38
  %64 = vst.msk [vmem:[%s1 + $0x38] sm:$0xff] %vm56, %v39
  %65 = vst.msk [vmem:[%s1 + $0x40] sm:$0xff] %vm56, %v40
  %66 = vst.msk [vmem:[%s1 + $0x48] sm:$0xff] %vm56, %v41
  %67 = vst.msk [vmem:[%s1 + $0x50] sm:$0xff] %vm56, %v42
  %68 = vst.msk [vmem:[%s1 + $0x58] sm:$0xff] %vm56, %v43
  %69 = vst.msk [vmem:[%s1 + $0x60] sm:$0xff] %vm56, %v44
  %70 = vst.msk [vmem:[%s1 + $0x68] sm:$0xff] %vm56, %v45
  %71 = vst.msk [vmem:[%s1 + $0x70] sm:$0xff] %vm56, %v46
  %72 = vst.msk [vmem:[%s1 + $0x78] sm:$0xff] %vm56, %v47
  %73 = vst.msk [vmem:[%s1 + $0x80] sm:$0xff] %vm56, %v48
  %74 = vst.msk [vmem:[%s1 + $0x88] sm:$0xff] %vm56, %v49
  %75 = vst.msk [vmem:[%s1 + $0x90] sm:$0xff] %vm56, %v50
  %76 = vst.msk [vmem:[%s1 + $0x98] sm:$0xff] %vm56, %v51
  %77 = vst.msk [vmem:[%s1 + $0xa0] sm:$0xff] %vm56, %v52
  %78 = vst.msk [vmem:[%s1 + $0xa8] sm:$0xff] %vm56, %v53
  %79 = vst.msk [vmem:[%s1 + $0xb0] sm:$0xff] %vm56, %v54
  %80 = vst.msk [vmem:[%s1 + $0xb8] sm:$0xff] %vm56, %v55
  // Predicated region
  $region6: #{model_forward.1} parent=0 // pred_check
    _
  $region7: #{model_forward.1} parent=0 // pred_check_branch
    %82 = sbr.rel (0) target = $region9
  $region8: #{model_forward.1} parent=0 // pred_region
    _
  $region9: #{model_forward.1} parent=0 // pred_fallthru
    _
  // Predicated region
  $region10: #{model_forward.1} parent=0 // pred_check
    _
  $region11: #{model_forward.1} parent=0 // pred_check_branch
    %84 = sbr.rel (0) target = $region13
  $region12: #{model_forward.1} parent=0 // pred_region
    _
  $region13: #{model_forward.1} parent=0 // pred_fallthru
    _

</llo_original>
